<compile_context>
chip_gen: v5e
topology: v5e:2x2
jax: 0.10.0
libtpu: 0.0.40
codegen_flags: <defaults>
</compile_context>

<pallas_src>
import functools

import jax
import jax.numpy as jnp
from jax.experimental import pallas as pl
from jax.experimental.pallas import tpu as pltpu

DILATIONS = (6, 12, 18)


def _tap_mean_mask(H, W, dilations):
    """(H*W, len(dilations)*9) f32.  Column b*9 + kh*3 + kw holds 1/(H*W) on the rectangle of x
    that the (kh, kw) tap of a 3x3 conv with dilation=padding=d touches (summed over all conv
    output positions), zero elsewhere.  x_flat @ mask yields every shifted-window mean."""
    hh = jnp.arange(H)[:, None]
    ww = jnp.arange(W)[None, :]
    cols = []
    for d in dilations:
        for kh in range(3):
            oh = (kh - 1) * d
            rmask = (hh >= max(0, oh)) & (hh < min(H, H + oh))
            for kw in range(3):
                ow = (kw - 1) * d
                cmask = (ww >= max(0, ow)) & (ww < min(W, W + ow))
                m = (rmask & cmask).astype(jnp.float32) / float(H * W)
                cols.append(m.reshape(H * W))
    return jnp.stack(cols, axis=1)


def multi_atrous_kernel(x_ref, mask_ref, w_ref, bconv_ref, w1_ref, b1_ref, o_ref,
                        *, nb, cout2, ss):
    """One grid step = one batch element, all branches.

    x_ref:     (1, cin, H*W)        VMEM  lane-dense input (spatial on lanes)
    mask_ref:  (H*W, nb*9)          VMEM  tap-mean mask (grid-resident)
    w_ref:     (nb, 9, cin, cmid)   VMEM  dilated 3x3 conv weights, per-tap, lane-dense
    bconv_ref: (cmid, nb)           VMEM  dilated conv biases (column per branch)
    w1_ref:    (cout2, cmid)        VMEM  shared gap-branch 1x1 conv weights
    b1_ref:    (cout2, 1)           VMEM  shared gap-branch 1x1 conv bias (column)
    o_ref:     (1, nb*cout2, ss)    VMEM  lane-dense output slab
    """
    x = x_ref[0]                                                       # (cin, HW)
    # Stage 1: every shifted-window mean for every (branch, tap) in one MXU matmul.
    s = jnp.dot(x, mask_ref[...], preferred_element_type=jnp.float32)  # (cin, nb*9)

    # Stage 2: hoisted conv-then-GAP.  Per batch element this is a matvec against the conv
    # weights, so run it lane-dense on the VPU (27 multiply-accumulates on (cin, cmid) tiles).
    m_rows = []
    for b in range(nb):                       # nb == 3 branches: tiny fixed unroll
        acc = w_ref[b, 0] * s[:, b * 9:b * 9 + 1]                      # (cin, cmid)
        for t in range(1, 9):
            acc = acc + w_ref[b, t] * s[:, b * 9 + t:b * 9 + t + 1]
        m_rows.append(jnp.sum(acc, axis=0, keepdims=True))             # (1, cmid)
    m_rows = jnp.concatenate(m_rows, axis=0)                           # (nb, cmid)

    # Single tiny orientation flip: channels back onto sublanes, then add conv bias.
    m_cols = jnp.transpose(m_rows) + bconv_ref[...]                    # (cmid, nb)

    # Stage 3: shared 1x1 conv + ReLU for all branches in one small MXU matmul.
    y = jnp.dot(w1_ref[...], m_cols,
                preferred_element_type=jnp.float32) + b1_ref[...]      # (cout2, nb)
    y = jnp.maximum(y, 0.0)

    # Stage 4: bilinear upsample of a 1x1 map == exact constant broadcast; one lane-dense store.
    slab = jnp.concatenate(
        [jnp.broadcast_to(y[:, b:b + 1], (cout2, ss)) for b in range(nb)], axis=0)
    o_ref[0] = slab                                                    # (nb*cout2, ss)


def multi_atrous_forward(x, wconv, bconv, w1, b1, *, size, dilations=DILATIONS):
    """x: (N, Cin, H, W) f32 NCHW.  wconv: (nb, cmid, Cin, 3, 3), bconv: (nb, cmid),
    w1: (cout2, cmid), b1: (cout2,).  Returns (N, nb*cout2, size, size) f32."""
    N, Cin, H, W = x.shape
    nb, cmid = wconv.shape[0], wconv.shape[1]
    cout2 = w1.shape[0]
    HW, SS = H * W, size * size

    x2d = x.reshape(N, Cin, HW).astype(jnp.float32)       # spatial on lanes (lane-dense)
    mask = _tap_mean_mask(H, W, dilations)                 # (HW, nb*9)
    # (nb, cmid, Cin, 3, 3) -> (nb, 9, Cin, cmid): per-tap weights, lane-dense in cmid.
    w_taps = wconv.reshape(nb, cmid, Cin, 9).transpose(0, 3, 2, 1).astype(jnp.float32)
    bconv_cols = bconv.T.astype(jnp.float32)               # (cmid, nb)
    w1f = w1.astype(jnp.float32)                           # (cout2, cmid)
    b1col = b1.reshape(cout2, 1).astype(jnp.float32)       # (cout2, 1)

    kernel = functools.partial(multi_atrous_kernel, nb=nb, cout2=cout2, ss=SS)

    flops = N * (2 * Cin * HW * nb * 9 + 2 * nb * 9 * Cin * cmid + 2 * nb * cout2 * cmid)
    bytes_accessed = 4 * (N * Cin * HW + HW * nb * 9 + nb * 9 * Cin * cmid
                          + cmid * nb + cout2 * cmid + cout2 + N * nb * cout2 * SS)

    # VMEM estimate: double-buffered x/out blocks + grid-resident mask & weights (lane-padded).
    lane = 128
    vmem_est = 4 * (2 * Cin * HW + 2 * nb * cout2 * SS
                    + HW * max(nb * 9, lane)
                    + nb * 9 * Cin * max(cmid, lane)
                    + cmid * lane + cout2 * max(cmid, lane) + cout2 * lane)
    vmem_limit = int(min(100 * 1024 * 1024, max(32 * 1024 * 1024, 2 * vmem_est)))

    out = pl.pallas_call(
        kernel,
        out_shape=jax.ShapeDtypeStruct((N, nb * cout2, SS), jnp.float32),
        grid=(N,),
        in_specs=[
            pl.BlockSpec((1, Cin, HW), lambda n: (n, 0, 0)),
            pl.BlockSpec((HW, nb * 9), lambda n: (0, 0)),
            pl.BlockSpec((nb, 9, Cin, cmid), lambda n: (0, 0, 0, 0)),
            pl.BlockSpec((cmid, nb), lambda n: (0, 0)),
            pl.BlockSpec((cout2, cmid), lambda n: (0, 0)),
            pl.BlockSpec((cout2, 1), lambda n: (0, 0)),
        ],
        out_specs=pl.BlockSpec((1, nb * cout2, SS), lambda n: (n, 0, 0)),
        compiler_params=pltpu.CompilerParams(
            dimension_semantics=("parallel",),
            vmem_limit_bytes=vmem_limit),
        cost_estimate=pl.CostEstimate(flops=flops, transcendentals=0,
                                      bytes_accessed=bytes_accessed),
    )(x2d, mask, w_taps, bconv_cols, w1f, b1col)

    # (N, nb*cout2, size*size) -> NCHW: pure reshape; channel order already matches
    # torch.cat over branches.
    return out.reshape(N, nb * cout2, size, size)


def reference_forward(x, wconv, bconv, w1, b1, *, size, dilations=DILATIONS):
    """Pure-JAX reference matching the PyTorch module."""
    outs = []
    for i, d in enumerate(dilations):
        conv = jax.lax.conv_general_dilated(
            x, wconv[i], window_strides=(1, 1),
            padding=[(d, d), (d, d)], rhs_dilation=(d, d),
            dimension_numbers=('NCHW', 'OIHW', 'NCHW'),
            precision=jax.lax.Precision.HIGHEST)
        conv = conv + bconv[i][None, :, None, None]
        gap = jnp.mean(conv, axis=(2, 3))                    # AdaptiveAvgPool2d(1)
        y = jnp.dot(gap, w1.T, precision=jax.lax.Precision.HIGHEST) + b1   # 1x1 conv
        y = jnp.maximum(y, 0.0)                              # ReLU
        y = jnp.broadcast_to(y[:, :, None, None],            # bilinear upsample of 1x1
                             (x.shape[0], y.shape[1], size, size))
        outs.append(y)
    return jnp.concatenate(outs, axis=1)


if __name__ == "__main__":
    # Small shapes consistent with the module.
    in_channel, out_channel, size = 4, 8, 16
    N, H, W = 2, 16, 16
    cmid, cout2 = out_channel // 4, out_channel // 2
    nb = len(DILATIONS)

    key = jax.random.PRNGKey(0)
    kx, kw, kb, kw1, kb1 = jax.random.split(key, 5)
    x = jax.random.normal(kx, (N, in_channel, H, W), jnp.float32)
    # Deterministic synthetic parameters (PyTorch shapes: OIHW / O / OI / O).
    wconv = jax.random.normal(kw, (nb, cmid, in_channel, 3, 3), jnp.float32) * 0.1
    bconv = jax.random.normal(kb, (nb, cmid), jnp.float32) * 0.1
    w1 = jax.random.normal(kw1, (cout2, cmid), jnp.float32) * 0.1
    b1 = jax.random.normal(kb1, (cout2,), jnp.float32) * 0.1

    out = multi_atrous_forward(x, wconv, bconv, w1, b1, size=size)
    out = jax.block_until_ready(out)

    ref = reference_forward(x, wconv, bconv, w1, b1, size=size)
    assert out.shape == (N, nb * cout2, size, size), out.shape
    err = float(jnp.max(jnp.abs(out - ref)))
    assert err < 1e-3, err

    print("KERNEL_OK")
</pallas_src>

<mosaic_0001>
module attributes {stable_mosaic.version = 11 : i64} {
  func.func @multi_atrous_kernel(%arg0: i32, %arg1: memref<1x4x256xf32, #tpu.memory_space<vmem>>, %arg2: memref<256x27xf32, #tpu.memory_space<vmem>>, %arg3: memref<3x9x4x2xf32, #tpu.memory_space<vmem>>, %arg4: memref<2x3xf32, #tpu.memory_space<vmem>>, %arg5: memref<4x2xf32, #tpu.memory_space<vmem>>, %arg6: memref<4x1xf32, #tpu.memory_space<vmem>>, %arg7: memref<1x12x256xf32, #tpu.memory_space<vmem>>) attributes {dimension_semantics = [#tpu.dimension_semantics<parallel>], iteration_bounds = array<i64: 2>, scalar_prefetch = 0 : i64, scratch_operands = 0 : i64, tpu.core_type = #tpu.core_type<tc>, window_params = [{transform_indices = @transform_0, window_bounds = array<i64: 1, 4, 256>}, {pipeline_mode = #tpu.pipeline_mode<synchronous>, transform_indices = @transform_1, window_bounds = array<i64: 256, 27>}, {pipeline_mode = #tpu.pipeline_mode<synchronous>, transform_indices = @transform_2, window_bounds = array<i64: 3, 9, 4, 2>}, {pipeline_mode = #tpu.pipeline_mode<synchronous>, transform_indices = @transform_3, window_bounds = array<i64: 2, 3>}, {pipeline_mode = #tpu.pipeline_mode<synchronous>, transform_indices = @transform_4, window_bounds = array<i64: 4, 2>}, {pipeline_mode = #tpu.pipeline_mode<synchronous>, transform_indices = @transform_5, window_bounds = array<i64: 4, 1>}, {transform_indices = @transform_6, window_bounds = array<i64: 1, 12, 256>}]} {
    %c0 = arith.constant 0 : index
    %c0_0 = arith.constant 0 : index
    %c0_1 = arith.constant 0 : index
    %0 = vector.load %arg1[%c0, %c0_0, %c0_1] : memref<1x4x256xf32, #tpu.memory_space<vmem>>, vector<1x4x256xf32>
    %1 = vector.shape_cast %0 : vector<1x4x256xf32> to vector<4x256xf32>
    %c0_2 = arith.constant 0 : index
    %c0_3 = arith.constant 0 : index
    %2 = vector.load %arg2[%c0_2, %c0_3] : memref<256x27xf32, #tpu.memory_space<vmem>>, vector<256x27xf32>
    %cst = arith.constant dense<0.000000e+00> : vector<4x27xf32>
    %3 = tpu.matmul %1, %2, %cst {dimension_numbers = #tpu.dot_dimension_numbers<[1], [0], [0], [1], [0, 0, 1, 1], [], []>} : vector<4x256xf32>, vector<256x27xf32>, vector<4x27xf32> -> vector<4x27xf32>
    %c0_4 = arith.constant 0 : index
    %c0_5 = arith.constant 0 : index
    %c0_6 = arith.constant 0 : index
    %c0_7 = arith.constant 0 : index
    %4 = vector.load %arg3[%c0_4, %c0_5, %c0_6, %c0_7] : memref<3x9x4x2xf32, #tpu.memory_space<vmem>>, vector<1x1x4x2xf32>
    %5 = vector.shape_cast %4 : vector<1x1x4x2xf32> to vector<4x2xf32>
    %6 = vector.extract_strided_slice %3 {offsets = [0, 0], sizes = [4, 1], strides = [1, 1]} : vector<4x27xf32> to vector<4x1xf32>
    %7 = vector.broadcast %6 : vector<4x1xf32> to vector<4x2xf32>
    %8 = arith.mulf %5, %7 : vector<4x2xf32>
    %c0_8 = arith.constant 0 : index
    %c1 = arith.constant 1 : index
    %c0_9 = arith.constant 0 : index
    %c0_10 = arith.constant 0 : index
    %9 = vector.load %arg3[%c0_8, %c1, %c0_9, %c0_10] : memref<3x9x4x2xf32, #tpu.memory_space<vmem>>, vector<1x1x4x2xf32>
    %10 = vector.shape_cast %9 : vector<1x1x4x2xf32> to vector<4x2xf32>
    %11 = vector.extract_strided_slice %3 {offsets = [0, 1], sizes = [4, 1], strides = [1, 1]} : vector<4x27xf32> to vector<4x1xf32>
    %12 = vector.broadcast %11 : vector<4x1xf32> to vector<4x2xf32>
    %13 = arith.mulf %10, %12 : vector<4x2xf32>
    %14 = arith.addf %8, %13 : vector<4x2xf32>
    %c0_11 = arith.constant 0 : index
    %c2 = arith.constant 2 : index
    %c0_12 = arith.constant 0 : index
    %c0_13 = arith.constant 0 : index
    %15 = vector.load %arg3[%c0_11, %c2, %c0_12, %c0_13] : memref<3x9x4x2xf32, #tpu.memory_space<vmem>>, vector<1x1x4x2xf32>
    %16 = vector.shape_cast %15 : vector<1x1x4x2xf32> to vector<4x2xf32>
    %17 = vector.extract_strided_slice %3 {offsets = [0, 2], sizes = [4, 1], strides = [1, 1]} : vector<4x27xf32> to vector<4x1xf32>
    %18 = vector.broadcast %17 : vector<4x1xf32> to vector<4x2xf32>
    %19 = arith.mulf %16, %18 : vector<4x2xf32>
    %20 = arith.addf %14, %19 : vector<4x2xf32>
    %c0_14 = arith.constant 0 : index
    %c3 = arith.constant 3 : index
    %c0_15 = arith.constant 0 : index
    %c0_16 = arith.constant 0 : index
    %21 = vector.load %arg3[%c0_14, %c3, %c0_15, %c0_16] : memref<3x9x4x2xf32, #tpu.memory_space<vmem>>, vector<1x1x4x2xf32>
    %22 = vector.shape_cast %21 : vector<1x1x4x2xf32> to vector<4x2xf32>
    %23 = vector.extract_strided_slice %3 {offsets = [0, 3], sizes = [4, 1], strides = [1, 1]} : vector<4x27xf32> to vector<4x1xf32>
    %24 = vector.broadcast %23 : vector<4x1xf32> to vector<4x2xf32>
    %25 = arith.mulf %22, %24 : vector<4x2xf32>
    %26 = arith.addf %20, %25 : vector<4x2xf32>
    %c0_17 = arith.constant 0 : index
    %c4 = arith.constant 4 : index
    %c0_18 = arith.constant 0 : index
    %c0_19 = arith.constant 0 : index
    %27 = vector.load %arg3[%c0_17, %c4, %c0_18, %c0_19] : memref<3x9x4x2xf32, #tpu.memory_space<vmem>>, vector<1x1x4x2xf32>
    %28 = vector.shape_cast %27 : vector<1x1x4x2xf32> to vector<4x2xf32>
    %29 = vector.extract_strided_slice %3 {offsets = [0, 4], sizes = [4, 1], strides = [1, 1]} : vector<4x27xf32> to vector<4x1xf32>
    %30 = vector.broadcast %29 : vector<4x1xf32> to vector<4x2xf32>
    %31 = arith.mulf %28, %30 : vector<4x2xf32>
    %32 = arith.addf %26, %31 : vector<4x2xf32>
    %c0_20 = arith.constant 0 : index
    %c5 = arith.constant 5 : index
    %c0_21 = arith.constant 0 : index
    %c0_22 = arith.constant 0 : index
    %33 = vector.load %arg3[%c0_20, %c5, %c0_21, %c0_22] : memref<3x9x4x2xf32, #tpu.memory_space<vmem>>, vector<1x1x4x2xf32>
    %34 = vector.shape_cast %33 : vector<1x1x4x2xf32> to vector<4x2xf32>
    %35 = vector.extract_strided_slice %3 {offsets = [0, 5], sizes = [4, 1], strides = [1, 1]} : vector<4x27xf32> to vector<4x1xf32>
    %36 = vector.broadcast %35 : vector<4x1xf32> to vector<4x2xf32>
    %37 = arith.mulf %34, %36 : vector<4x2xf32>
    %38 = arith.addf %32, %37 : vector<4x2xf32>
    %c0_23 = arith.constant 0 : index
    %c6 = arith.constant 6 : index
    %c0_24 = arith.constant 0 : index
    %c0_25 = arith.constant 0 : index
    %39 = vector.load %arg3[%c0_23, %c6, %c0_24, %c0_25] : memref<3x9x4x2xf32, #tpu.memory_space<vmem>>, vector<1x1x4x2xf32>
    %40 = vector.shape_cast %39 : vector<1x1x4x2xf32> to vector<4x2xf32>
    %41 = vector.extract_strided_slice %3 {offsets = [0, 6], sizes = [4, 1], strides = [1, 1]} : vector<4x27xf32> to vector<4x1xf32>
    %42 = vector.broadcast %41 : vector<4x1xf32> to vector<4x2xf32>
    %43 = arith.mulf %40, %42 : vector<4x2xf32>
    %44 = arith.addf %38, %43 : vector<4x2xf32>
    %c0_26 = arith.constant 0 : index
    %c7 = arith.constant 7 : index
    %c0_27 = arith.constant 0 : index
    %c0_28 = arith.constant 0 : index
    %45 = vector.load %arg3[%c0_26, %c7, %c0_27, %c0_28] : memref<3x9x4x2xf32, #tpu.memory_space<vmem>>, vector<1x1x4x2xf32>
    %46 = vector.shape_cast %45 : vector<1x1x4x2xf32> to vector<4x2xf32>
    %47 = vector.extract_strided_slice %3 {offsets = [0, 7], sizes = [4, 1], strides = [1, 1]} : vector<4x27xf32> to vector<4x1xf32>
    %48 = vector.broadcast %47 : vector<4x1xf32> to vector<4x2xf32>
    %49 = arith.mulf %46, %48 : vector<4x2xf32>
    %50 = arith.addf %44, %49 : vector<4x2xf32>
    %c0_29 = arith.constant 0 : index
    %c8 = arith.constant 8 : index
    %c0_30 = arith.constant 0 : index
    %c0_31 = arith.constant 0 : index
    %51 = vector.load %arg3[%c0_29, %c8, %c0_30, %c0_31] : memref<3x9x4x2xf32, #tpu.memory_space<vmem>>, vector<1x1x4x2xf32>
    %52 = vector.shape_cast %51 : vector<1x1x4x2xf32> to vector<4x2xf32>
    %53 = vector.extract_strided_slice %3 {offsets = [0, 8], sizes = [4, 1], strides = [1, 1]} : vector<4x27xf32> to vector<4x1xf32>
    %54 = vector.broadcast %53 : vector<4x1xf32> to vector<4x2xf32>
    %55 = arith.mulf %52, %54 : vector<4x2xf32>
    %56 = arith.addf %50, %55 : vector<4x2xf32>
    %cst_32 = arith.constant dense<0.000000e+00> : vector<2xf32>
    %57 = vector.multi_reduction <add>, %56, %cst_32 [0] : vector<4x2xf32> to vector<2xf32>
    %58 = vector.shape_cast %57 : vector<2xf32> to vector<1x2xf32>
    %c1_33 = arith.constant 1 : index
    %c0_34 = arith.constant 0 : index
    %c0_35 = arith.constant 0 : index
    %c0_36 = arith.constant 0 : index
    %59 = vector.load %arg3[%c1_33, %c0_34, %c0_35, %c0_36] : memref<3x9x4x2xf32, #tpu.memory_space<vmem>>, vector<1x1x4x2xf32>
    %60 = vector.shape_cast %59 : vector<1x1x4x2xf32> to vector<4x2xf32>
    %61 = vector.extract_strided_slice %3 {offsets = [0, 9], sizes = [4, 1], strides = [1, 1]} : vector<4x27xf32> to vector<4x1xf32>
    %62 = vector.broadcast %61 : vector<4x1xf32> to vector<4x2xf32>
    %63 = arith.mulf %60, %62 : vector<4x2xf32>
    %c1_37 = arith.constant 1 : index
    %c1_38 = arith.constant 1 : index
    %c0_39 = arith.constant 0 : index
    %c0_40 = arith.constant 0 : index
    %64 = vector.load %arg3[%c1_37, %c1_38, %c0_39, %c0_40] : memref<3x9x4x2xf32, #tpu.memory_space<vmem>>, vector<1x1x4x2xf32>
    %65 = vector.shape_cast %64 : vector<1x1x4x2xf32> to vector<4x2xf32>
    %66 = vector.extract_strided_slice %3 {offsets = [0, 10], sizes = [4, 1], strides = [1, 1]} : vector<4x27xf32> to vector<4x1xf32>
    %67 = vector.broadcast %66 : vector<4x1xf32> to vector<4x2xf32>
    %68 = arith.mulf %65, %67 : vector<4x2xf32>
    %69 = arith.addf %63, %68 : vector<4x2xf32>
    %c1_41 = arith.constant 1 : index
    %c2_42 = arith.constant 2 : index
    %c0_43 = arith.constant 0 : index
    %c0_44 = arith.constant 0 : index
    %70 = vector.load %arg3[%c1_41, %c2_42, %c0_43, %c0_44] : memref<3x9x4x2xf32, #tpu.memory_space<vmem>>, vector<1x1x4x2xf32>
    %71 = vector.shape_cast %70 : vector<1x1x4x2xf32> to vector<4x2xf32>
    %72 = vector.extract_strided_slice %3 {offsets = [0, 11], sizes = [4, 1], strides = [1, 1]} : vector<4x27xf32> to vector<4x1xf32>
    %73 = vector.broadcast %72 : vector<4x1xf32> to vector<4x2xf32>
    %74 = arith.mulf %71, %73 : vector<4x2xf32>
    %75 = arith.addf %69, %74 : vector<4x2xf32>
    %c1_45 = arith.constant 1 : index
    %c3_46 = arith.constant 3 : index
    %c0_47 = arith.constant 0 : index
    %c0_48 = arith.constant 0 : index
    %76 = vector.load %arg3[%c1_45, %c3_46, %c0_47, %c0_48] : memref<3x9x4x2xf32, #tpu.memory_space<vmem>>, vector<1x1x4x2xf32>
    %77 = vector.shape_cast %76 : vector<1x1x4x2xf32> to vector<4x2xf32>
    %78 = vector.extract_strided_slice %3 {offsets = [0, 12], sizes = [4, 1], strides = [1, 1]} : vector<4x27xf32> to vector<4x1xf32>
    %79 = vector.broadcast %78 : vector<4x1xf32> to vector<4x2xf32>
    %80 = arith.mulf %77, %79 : vector<4x2xf32>
    %81 = arith.addf %75, %80 : vector<4x2xf32>
    %c1_49 = arith.constant 1 : index
    %c4_50 = arith.constant 4 : index
    %c0_51 = arith.constant 0 : index
    %c0_52 = arith.constant 0 : index
    %82 = vector.load %arg3[%c1_49, %c4_50, %c0_51, %c0_52] : memref<3x9x4x2xf32, #tpu.memory_space<vmem>>, vector<1x1x4x2xf32>
    %83 = vector.shape_cast %82 : vector<1x1x4x2xf32> to vector<4x2xf32>
    %84 = vector.extract_strided_slice %3 {offsets = [0, 13], sizes = [4, 1], strides = [1, 1]} : vector<4x27xf32> to vector<4x1xf32>
    %85 = vector.broadcast %84 : vector<4x1xf32> to vector<4x2xf32>
    %86 = arith.mulf %83, %85 : vector<4x2xf32>
    %87 = arith.addf %81, %86 : vector<4x2xf32>
    %c1_53 = arith.constant 1 : index
    %c5_54 = arith.constant 5 : index
    %c0_55 = arith.constant 0 : index
    %c0_56 = arith.constant 0 : index
    %88 = vector.load %arg3[%c1_53, %c5_54, %c0_55, %c0_56] : memref<3x9x4x2xf32, #tpu.memory_space<vmem>>, vector<1x1x4x2xf32>
    %89 = vector.shape_cast %88 : vector<1x1x4x2xf32> to vector<4x2xf32>
    %90 = vector.extract_strided_slice %3 {offsets = [0, 14], sizes = [4, 1], strides = [1, 1]} : vector<4x27xf32> to vector<4x1xf32>
    %91 = vector.broadcast %90 : vector<4x1xf32> to vector<4x2xf32>
    %92 = arith.mulf %89, %91 : vector<4x2xf32>
    %93 = arith.addf %87, %92 : vector<4x2xf32>
    %c1_57 = arith.constant 1 : index
    %c6_58 = arith.constant 6 : index
    %c0_59 = arith.constant 0 : index
    %c0_60 = arith.constant 0 : index
    %94 = vector.load %arg3[%c1_57, %c6_58, %c0_59, %c0_60] : memref<3x9x4x2xf32, #tpu.memory_space<vmem>>, vector<1x1x4x2xf32>
    %95 = vector.shape_cast %94 : vector<1x1x4x2xf32> to vector<4x2xf32>
    %96 = vector.extract_strided_slice %3 {offsets = [0, 15], sizes = [4, 1], strides = [1, 1]} : vector<4x27xf32> to vector<4x1xf32>
    %97 = vector.broadcast %96 : vector<4x1xf32> to vector<4x2xf32>
    %98 = arith.mulf %95, %97 : vector<4x2xf32>
    %99 = arith.addf %93, %98 : vector<4x2xf32>
    %c1_61 = arith.constant 1 : index
    %c7_62 = arith.constant 7 : index
    %c0_63 = arith.constant 0 : index
    %c0_64 = arith.constant 0 : index
    %100 = vector.load %arg3[%c1_61, %c7_62, %c0_63, %c0_64] : memref<3x9x4x2xf32, #tpu.memory_space<vmem>>, vector<1x1x4x2xf32>
    %101 = vector.shape_cast %100 : vector<1x1x4x2xf32> to vector<4x2xf32>
    %102 = vector.extract_strided_slice %3 {offsets = [0, 16], sizes = [4, 1], strides = [1, 1]} : vector<4x27xf32> to vector<4x1xf32>
    %103 = vector.broadcast %102 : vector<4x1xf32> to vector<4x2xf32>
    %104 = arith.mulf %101, %103 : vector<4x2xf32>
    %105 = arith.addf %99, %104 : vector<4x2xf32>
    %c1_65 = arith.constant 1 : index
    %c8_66 = arith.constant 8 : index
    %c0_67 = arith.constant 0 : index
    %c0_68 = arith.constant 0 : index
    %106 = vector.load %arg3[%c1_65, %c8_66, %c0_67, %c0_68] : memref<3x9x4x2xf32, #tpu.memory_space<vmem>>, vector<1x1x4x2xf32>
    %107 = vector.shape_cast %106 : vector<1x1x4x2xf32> to vector<4x2xf32>
    %108 = vector.extract_strided_slice %3 {offsets = [0, 17], sizes = [4, 1], strides = [1, 1]} : vector<4x27xf32> to vector<4x1xf32>
    %109 = vector.broadcast %108 : vector<4x1xf32> to vector<4x2xf32>
    %110 = arith.mulf %107, %109 : vector<4x2xf32>
    %111 = arith.addf %105, %110 : vector<4x2xf32>
    %cst_69 = arith.constant dense<0.000000e+00> : vector<2xf32>
    %112 = vector.multi_reduction <add>, %111, %cst_69 [0] : vector<4x2xf32> to vector<2xf32>
    %113 = vector.shape_cast %112 : vector<2xf32> to vector<1x2xf32>
    %c2_70 = arith.constant 2 : index
    %c0_71 = arith.constant 0 : index
    %c0_72 = arith.constant 0 : index
    %c0_73 = arith.constant 0 : index
    %114 = vector.load %arg3[%c2_70, %c0_71, %c0_72, %c0_73] : memref<3x9x4x2xf32, #tpu.memory_space<vmem>>, vector<1x1x4x2xf32>
    %115 = vector.shape_cast %114 : vector<1x1x4x2xf32> to vector<4x2xf32>
    %116 = vector.extract_strided_slice %3 {offsets = [0, 18], sizes = [4, 1], strides = [1, 1]} : vector<4x27xf32> to vector<4x1xf32>
    %117 = vector.broadcast %116 : vector<4x1xf32> to vector<4x2xf32>
    %118 = arith.mulf %115, %117 : vector<4x2xf32>
    %c2_74 = arith.constant 2 : index
    %c1_75 = arith.constant 1 : index
    %c0_76 = arith.constant 0 : index
    %c0_77 = arith.constant 0 : index
    %119 = vector.load %arg3[%c2_74, %c1_75, %c0_76, %c0_77] : memref<3x9x4x2xf32, #tpu.memory_space<vmem>>, vector<1x1x4x2xf32>
    %120 = vector.shape_cast %119 : vector<1x1x4x2xf32> to vector<4x2xf32>
    %121 = vector.extract_strided_slice %3 {offsets = [0, 19], sizes = [4, 1], strides = [1, 1]} : vector<4x27xf32> to vector<4x1xf32>
    %122 = vector.broadcast %121 : vector<4x1xf32> to vector<4x2xf32>
    %123 = arith.mulf %120, %122 : vector<4x2xf32>
    %124 = arith.addf %118, %123 : vector<4x2xf32>
    %c2_78 = arith.constant 2 : index
    %c2_79 = arith.constant 2 : index
    %c0_80 = arith.constant 0 : index
    %c0_81 = arith.constant 0 : index
    %125 = vector.load %arg3[%c2_78, %c2_79, %c0_80, %c0_81] : memref<3x9x4x2xf32, #tpu.memory_space<vmem>>, vector<1x1x4x2xf32>
    %126 = vector.shape_cast %125 : vector<1x1x4x2xf32> to vector<4x2xf32>
    %127 = vector.extract_strided_slice %3 {offsets = [0, 20], sizes = [4, 1], strides = [1, 1]} : vector<4x27xf32> to vector<4x1xf32>
    %128 = vector.broadcast %127 : vector<4x1xf32> to vector<4x2xf32>
    %129 = arith.mulf %126, %128 : vector<4x2xf32>
    %130 = arith.addf %124, %129 : vector<4x2xf32>
    %c2_82 = arith.constant 2 : index
    %c3_83 = arith.constant 3 : index
    %c0_84 = arith.constant 0 : index
    %c0_85 = arith.constant 0 : index
    %131 = vector.load %arg3[%c2_82, %c3_83, %c0_84, %c0_85] : memref<3x9x4x2xf32, #tpu.memory_space<vmem>>, vector<1x1x4x2xf32>
    %132 = vector.shape_cast %131 : vector<1x1x4x2xf32> to vector<4x2xf32>
    %133 = vector.extract_strided_slice %3 {offsets = [0, 21], sizes = [4, 1], strides = [1, 1]} : vector<4x27xf32> to vector<4x1xf32>
    %134 = vector.broadcast %133 : vector<4x1xf32> to vector<4x2xf32>
    %135 = arith.mulf %132, %134 : vector<4x2xf32>
    %136 = arith.addf %130, %135 : vector<4x2xf32>
    %c2_86 = arith.constant 2 : index
    %c4_87 = arith.constant 4 : index
    %c0_88 = arith.constant 0 : index
    %c0_89 = arith.constant 0 : index
    %137 = vector.load %arg3[%c2_86, %c4_87, %c0_88, %c0_89] : memref<3x9x4x2xf32, #tpu.memory_space<vmem>>, vector<1x1x4x2xf32>
    %138 = vector.shape_cast %137 : vector<1x1x4x2xf32> to vector<4x2xf32>
    %139 = vector.extract_strided_slice %3 {offsets = [0, 22], sizes = [4, 1], strides = [1, 1]} : vector<4x27xf32> to vector<4x1xf32>
    %140 = vector.broadcast %139 : vector<4x1xf32> to vector<4x2xf32>
    %141 = arith.mulf %138, %140 : vector<4x2xf32>
    %142 = arith.addf %136, %141 : vector<4x2xf32>
    %c2_90 = arith.constant 2 : index
    %c5_91 = arith.constant 5 : index
    %c0_92 = arith.constant 0 : index
    %c0_93 = arith.constant 0 : index
    %143 = vector.load %arg3[%c2_90, %c5_91, %c0_92, %c0_93] : memref<3x9x4x2xf32, #tpu.memory_space<vmem>>, vector<1x1x4x2xf32>
    %144 = vector.shape_cast %143 : vector<1x1x4x2xf32> to vector<4x2xf32>
    %145 = vector.extract_strided_slice %3 {offsets = [0, 23], sizes = [4, 1], strides = [1, 1]} : vector<4x27xf32> to vector<4x1xf32>
    %146 = vector.broadcast %145 : vector<4x1xf32> to vector<4x2xf32>
    %147 = arith.mulf %144, %146 : vector<4x2xf32>
    %148 = arith.addf %142, %147 : vector<4x2xf32>
    %c2_94 = arith.constant 2 : index
    %c6_95 = arith.constant 6 : index
    %c0_96 = arith.constant 0 : index
    %c0_97 = arith.constant 0 : index
    %149 = vector.load %arg3[%c2_94, %c6_95, %c0_96, %c0_97] : memref<3x9x4x2xf32, #tpu.memory_space<vmem>>, vector<1x1x4x2xf32>
    %150 = vector.shape_cast %149 : vector<1x1x4x2xf32> to vector<4x2xf32>
    %151 = vector.extract_strided_slice %3 {offsets = [0, 24], sizes = [4, 1], strides = [1, 1]} : vector<4x27xf32> to vector<4x1xf32>
    %152 = vector.broadcast %151 : vector<4x1xf32> to vector<4x2xf32>
    %153 = arith.mulf %150, %152 : vector<4x2xf32>
    %154 = arith.addf %148, %153 : vector<4x2xf32>
    %c2_98 = arith.constant 2 : index
    %c7_99 = arith.constant 7 : index
    %c0_100 = arith.constant 0 : index
    %c0_101 = arith.constant 0 : index
    %155 = vector.load %arg3[%c2_98, %c7_99, %c0_100, %c0_101] : memref<3x9x4x2xf32, #tpu.memory_space<vmem>>, vector<1x1x4x2xf32>
    %156 = vector.shape_cast %155 : vector<1x1x4x2xf32> to vector<4x2xf32>
    %157 = vector.extract_strided_slice %3 {offsets = [0, 25], sizes = [4, 1], strides = [1, 1]} : vector<4x27xf32> to vector<4x1xf32>
    %158 = vector.broadcast %157 : vector<4x1xf32> to vector<4x2xf32>
    %159 = arith.mulf %156, %158 : vector<4x2xf32>
    %160 = arith.addf %154, %159 : vector<4x2xf32>
    %c2_102 = arith.constant 2 : index
    %c8_103 = arith.constant 8 : index
    %c0_104 = arith.constant 0 : index
    %c0_105 = arith.constant 0 : index
    %161 = vector.load %arg3[%c2_102, %c8_103, %c0_104, %c0_105] : memref<3x9x4x2xf32, #tpu.memory_space<vmem>>, vector<1x1x4x2xf32>
    %162 = vector.shape_cast %161 : vector<1x1x4x2xf32> to vector<4x2xf32>
    %163 = vector.extract_strided_slice %3 {offsets = [0, 26], sizes = [4, 1], strides = [1, 1]} : vector<4x27xf32> to vector<4x1xf32>
    %164 = vector.broadcast %163 : vector<4x1xf32> to vector<4x2xf32>
    %165 = arith.mulf %162, %164 : vector<4x2xf32>
    %166 = arith.addf %160, %165 : vector<4x2xf32>
    %cst_106 = arith.constant dense<0.000000e+00> : vector<2xf32>
    %167 = vector.multi_reduction <add>, %166, %cst_106 [0] : vector<4x2xf32> to vector<2xf32>
    %168 = vector.shape_cast %167 : vector<2xf32> to vector<1x2xf32>
    %169 = tpu.concatenate %58, %113, %168 in 0 : vector<1x2xf32>, vector<1x2xf32>, vector<1x2xf32> -> vector<3x2xf32>
    %170 = tpu.transpose %169, [1, 0] : vector<3x2xf32> -> vector<2x3xf32>
    %c0_107 = arith.constant 0 : index
    %c0_108 = arith.constant 0 : index
    %171 = vector.load %arg4[%c0_107, %c0_108] : memref<2x3xf32, #tpu.memory_space<vmem>>, vector<2x3xf32>
    %172 = arith.addf %170, %171 : vector<2x3xf32>
    %c0_109 = arith.constant 0 : index
    %c0_110 = arith.constant 0 : index
    %173 = vector.load %arg5[%c0_109, %c0_110] : memref<4x2xf32, #tpu.memory_space<vmem>>, vector<4x2xf32>
    %cst_111 = arith.constant dense<0.000000e+00> : vector<4x3xf32>
    %174 = tpu.matmul %173, %172, %cst_111 {dimension_numbers = #tpu.dot_dimension_numbers<[1], [0], [0], [1], [0, 0, 1, 1], [], []>} : vector<4x2xf32>, vector<2x3xf32>, vector<4x3xf32> -> vector<4x3xf32>
    %c0_112 = arith.constant 0 : index
    %c0_113 = arith.constant 0 : index
    %175 = vector.load %arg6[%c0_112, %c0_113] : memref<4x1xf32, #tpu.memory_space<vmem>>, vector<4x1xf32>
    %176 = vector.broadcast %175 : vector<4x1xf32> to vector<4x3xf32>
    %177 = arith.addf %174, %176 : vector<4x3xf32>
    %cst_114 = arith.constant 0.000000e+00 : f32
    %178 = vector.broadcast %cst_114 : f32 to vector<4x3xf32>
    %179 = arith.maximumf %177, %178 : vector<4x3xf32>
    %180 = vector.extract_strided_slice %179 {offsets = [0, 0], sizes = [4, 1], strides = [1, 1]} : vector<4x3xf32> to vector<4x1xf32>
    %181 = vector.shape_cast %180 : vector<4x1xf32> to vector<4x1xf32>
    %182 = vector.broadcast %181 : vector<4x1xf32> to vector<4x256xf32>
    %183 = vector.extract_strided_slice %179 {offsets = [0, 1], sizes = [4, 1], strides = [1, 1]} : vector<4x3xf32> to vector<4x1xf32>
    %184 = vector.shape_cast %183 : vector<4x1xf32> to vector<4x1xf32>
    %185 = vector.broadcast %184 : vector<4x1xf32> to vector<4x256xf32>
    %186 = vector.extract_strided_slice %179 {offsets = [0, 2], sizes = [4, 1], strides = [1, 1]} : vector<4x3xf32> to vector<4x1xf32>
    %187 = vector.shape_cast %186 : vector<4x1xf32> to vector<4x1xf32>
    %188 = vector.broadcast %187 : vector<4x1xf32> to vector<4x256xf32>
    %189 = tpu.concatenate %182, %185, %188 in 0 : vector<4x256xf32>, vector<4x256xf32>, vector<4x256xf32> -> vector<12x256xf32>
    %c0_115 = arith.constant 0 : index
    %c0_116 = arith.constant 0 : index
    %c0_117 = arith.constant 0 : index
    %190 = vector.load %arg7[%c0_115, %c0_116, %c0_117] : memref<1x12x256xf32, #tpu.memory_space<vmem>>, vector<1x12x256xf32>
    %191 = vector.shape_cast %190 : vector<1x12x256xf32> to vector<12x256xf32>
    %192 = vector.shape_cast %189 : vector<12x256xf32> to vector<1x12x256xf32>
    tpu.vector_store %arg7[%c0_115, %c0_116, %c0_117], %192 {strides = array<i32>} : memref<1x12x256xf32, #tpu.memory_space<vmem>>, vector<1x12x256xf32>,
    return
  }
  func.func @transform_0(%arg0: i32) -> (i32, i32, i32) {
    %c0_i32 = arith.constant 0 : i32
    %c0_i32_0 = arith.constant 0 : i32
    %c0_i32_1 = arith.constant 0 : i32
    return %arg0, %c0_i32, %c0_i32_0 : i32, i32, i32
  }
  func.func @transform_1(%arg0: i32) -> (i32, i32) {
    %c0_i32 = arith.constant 0 : i32
    %c0_i32_0 = arith.constant 0 : i32
    %c0_i32_1 = arith.constant 0 : i32
    return %c0_i32, %c0_i32_0 : i32, i32
  }
  func.func @transform_2(%arg0: i32) -> (i32, i32, i32, i32) {
    %c0_i32 = arith.constant 0 : i32
    %c0_i32_0 = arith.constant 0 : i32
    %c0_i32_1 = arith.constant 0 : i32
    %c0_i32_2 = arith.constant 0 : i32
    %c0_i32_3 = arith.constant 0 : i32
    return %c0_i32, %c0_i32_0, %c0_i32_1, %c0_i32_2 : i32, i32, i32, i32
  }
  func.func @transform_3(%arg0: i32) -> (i32, i32) {
    %c0_i32 = arith.constant 0 : i32
    %c0_i32_0 = arith.constant 0 : i32
    %c0_i32_1 = arith.constant 0 : i32
    return %c0_i32, %c0_i32_0 : i32, i32
  }
  func.func @transform_4(%arg0: i32) -> (i32, i32) {
    %c0_i32 = arith.constant 0 : i32
    %c0_i32_0 = arith.constant 0 : i32
    %c0_i32_1 = arith.constant 0 : i32
    return %c0_i32, %c0_i32_0 : i32, i32
  }
  func.func @transform_5(%arg0: i32) -> (i32, i32) {
    %c0_i32 = arith.constant 0 : i32
    %c0_i32_0 = arith.constant 0 : i32
    %c0_i32_1 = arith.constant 0 : i32
    return %c0_i32, %c0_i32_0 : i32, i32
  }
  func.func @transform_6(%arg0: i32) -> (i32, i32, i32) {
    %c0_i32 = arith.constant 0 : i32
    %c0_i32_0 = arith.constant 0 : i32
    %c0_i32_1 = arith.constant 0 : i32
    return %arg0, %c0_i32, %c0_i32_0 : i32, i32, i32
  }
}

</mosaic_0001>

<llo_original>
// kernel: tpu_custom_call.1
$region0: #{tpu_custom_call.1}
  #allocation0 [shape = 'u32[]', space=smem, size = 0x4, offset = 0x4, fixed_abs, tag = 'smem constant byte address 0x4 - core index']
  #allocation1 [shape = 'u32[72,128]{1,0:T(1,128)}', space=vmem, size = 0x9000, scoped, tag = 'internal scratch']
  %s0 = inlined_call_operand.vmem [shape: f32[2,4,256], index: 0, kind: input, shape index: {}]
  %s1 = inlined_call_operand.vmem [shape: f32[256,27], index: 1, kind: input, shape index: {}]
  %s2 = inlined_call_operand.vmem [shape: f32[3,9,4,2], index: 2, kind: input, shape index: {}]
  %s3 = inlined_call_operand.vmem [shape: f32[2,3], index: 3, kind: input, shape index: {}]
  %s4 = inlined_call_operand.vmem [shape: f32[4,2], index: 4, kind: input, shape index: {}]
  %s5 = inlined_call_operand.vmem [shape: f32[4,1], index: 5, kind: input, shape index: {}]
  %s6 = inlined_call_operand.vmem [shape: f32[2,12,256], index: 6, kind: output, shape index: {}]
  %s7 = sld [smem:[#allocation0]]
  $region57: #{tpu_custom_call.1} parent=0
    _
  %s9 = ssub.s32 1, %s7
  %s10 = scalar_select 0, %s9, %s7
  loop: start=0, step=1, limit=4
  $region2: #{tpu_custom_call.1} parent=0 // loop_pre_header
    _
  $region3: #{tpu_custom_call.1} parent=0 // loop_header
    %s12 = sphi 0, %s16
    %p13 = scmp.ge.s32.totalorder %s12, 4
    %s22 = sphi 0, %s24
    %s25 = sphi 0, %s22
    %s26 = sphi 0, %s25
    %s42 = sphi 0, %s26
    %s46 = sphi 0, %s46
    %s48 = sphi 0, %s46
    %s49 = sphi 0, %s48
    %s63 = sphi 0, %s49
    %s67 = sphi 0, %s67
    %s69 = sphi 0, %s67
    %s70 = sphi 0, %s69
    %s84 = sphi 0, %s70
    %s88 = sphi 0, %s88
    %s90 = sphi 0, %s88
    %s91 = sphi 0, %s90
    %s105 = sphi 0, %s91
    %s109 = sphi 0, %s109
    %s111 = sphi 0, %s109
    %s112 = sphi 0, %s111
    %s126 = sphi 0, %s112
    %s130 = sphi 0, %s130
    %s132 = sphi 0, %s130
    %s133 = sphi 0, %s132
    %s147 = sphi 0, %s133
    %s153 = sphi 0, %s155
    %s156 = sphi 0, %s153
    %s157 = sphi 0, %s156
    %s173 = sphi 0, %s157
  $region4: #{tpu_custom_call.1} parent=0 // loop_header_branch
    %15 = sbr.rel (%p13) target = $region8
  $region5: #{tpu_custom_call.1} parent=0 // loop_body
    %s17 = ssub.s32 %s12, 1
    %s18 = ssub.s32 %s12, 2
    %s19 = sadd.s32 %s12, 1
    %s20 = ssub.s32 %s12, %s19
    %p21 = scmp.eq.s32.totalorder %s20, 0
    %s23 = sadd.s32 %s22, 1
    %s24 = scalar_select %p21, %s22, %s23
    %p27 = pneg %p21
    %p28 = scmp.eq.s32.totalorder %s12, 1
    %p29 = por %p27, %p28
    %p30 = scmp.ne.s32.totalorder %s22, %s25
    %p31 = scmp.eq.s32.totalorder %s12, 0
    %p32 = por %p30, %p31
    %p33 = scmp.ne.s32.totalorder %s22, %s25
    %p34 = scmp.eq.s32.totalorder %s17, 1
    %p35 = por %p33, %p34
    %p36 = scmp.ne.s32.totalorder %s25, %s26
    %p37 = scmp.eq.s32.totalorder %s17, 0
    %p38 = por %p36, %p37
    %p39 = scmp.ne.s32.totalorder %s25, %s26
    %p40 = scmp.eq.s32.totalorder %s18, 1
    %p41 = por %p39, %p40
    %p43 = scmp.ne.s32.totalorder %s26, %s42
    %p44 = scmp.eq.s32.totalorder %s18, 0
    %p45 = por %p43, %p44
    %s47 = sadd.s32 %s46, 1
    %p50 = scmp.eq.s32.totalorder %s12, 1
    %p51 = scmp.ne.s32.totalorder %s46, %s48
    %p52 = scmp.eq.s32.totalorder %s12, 0
    %p53 = por %p51, %p52
    %p54 = scmp.ne.s32.totalorder %s46, %s48
    %p55 = scmp.eq.s32.totalorder %s17, 1
    %p56 = por %p54, %p55
    %p57 = scmp.ne.s32.totalorder %s48, %s49
    %p58 = scmp.eq.s32.totalorder %s17, 0
    %p59 = por %p57, %p58
    %p60 = scmp.ne.s32.totalorder %s48, %s49
    %p61 = scmp.eq.s32.totalorder %s18, 1
    %p62 = por %p60, %p61
    %p64 = scmp.ne.s32.totalorder %s49, %s63
    %p65 = scmp.eq.s32.totalorder %s18, 0
    %p66 = por %p64, %p65
    %s68 = sadd.s32 %s67, 1
    %p71 = scmp.eq.s32.totalorder %s12, 1
    %p72 = scmp.ne.s32.totalorder %s67, %s69
    %p73 = scmp.eq.s32.totalorder %s12, 0
    %p74 = por %p72, %p73
    %p75 = scmp.ne.s32.totalorder %s67, %s69
    %p76 = scmp.eq.s32.totalorder %s17, 1
    %p77 = por %p75, %p76
    %p78 = scmp.ne.s32.totalorder %s69, %s70
    %p79 = scmp.eq.s32.totalorder %s17, 0
    %p80 = por %p78, %p79
    %p81 = scmp.ne.s32.totalorder %s69, %s70
    %p82 = scmp.eq.s32.totalorder %s18, 1
    %p83 = por %p81, %p82
    %p85 = scmp.ne.s32.totalorder %s70, %s84
    %p86 = scmp.eq.s32.totalorder %s18, 0
    %p87 = por %p85, %p86
    %s89 = sadd.s32 %s88, 1
    %p92 = scmp.eq.s32.totalorder %s12, 1
    %p93 = scmp.ne.s32.totalorder %s88, %s90
    %p94 = scmp.eq.s32.totalorder %s12, 0
    %p95 = por %p93, %p94
    %p96 = scmp.ne.s32.totalorder %s88, %s90
    %p97 = scmp.eq.s32.totalorder %s17, 1
    %p98 = por %p96, %p97
    %p99 = scmp.ne.s32.totalorder %s90, %s91
    %p100 = scmp.eq.s32.totalorder %s17, 0
    %p101 = por %p99, %p100
    %p102 = scmp.ne.s32.totalorder %s90, %s91
    %p103 = scmp.eq.s32.totalorder %s18, 1
    %p104 = por %p102, %p103
    %p106 = scmp.ne.s32.totalorder %s91, %s105
    %p107 = scmp.eq.s32.totalorder %s18, 0
    %p108 = por %p106, %p107
    %s110 = sadd.s32 %s109, 1
    %p113 = scmp.eq.s32.totalorder %s12, 1
    %p114 = scmp.ne.s32.totalorder %s109, %s111
    %p115 = scmp.eq.s32.totalorder %s12, 0
    %p116 = por %p114, %p115
    %p117 = scmp.ne.s32.totalorder %s109, %s111
    %p118 = scmp.eq.s32.totalorder %s17, 1
    %p119 = por %p117, %p118
    %p120 = scmp.ne.s32.totalorder %s111, %s112
    %p121 = scmp.eq.s32.totalorder %s17, 0
    %p122 = por %p120, %p121
    %p123 = scmp.ne.s32.totalorder %s111, %s112
    %p124 = scmp.eq.s32.totalorder %s18, 1
    %p125 = por %p123, %p124
    %p127 = scmp.ne.s32.totalorder %s112, %s126
    %p128 = scmp.eq.s32.totalorder %s18, 0
    %p129 = por %p127, %p128
    %s131 = sadd.s32 %s130, 1
    %p134 = scmp.eq.s32.totalorder %s12, 1
    %p135 = scmp.ne.s32.totalorder %s130, %s132
    %p136 = scmp.eq.s32.totalorder %s12, 0
    %p137 = por %p135, %p136
    %p138 = scmp.ne.s32.totalorder %s130, %s132
    %p139 = scmp.eq.s32.totalorder %s17, 1
    %p140 = por %p138, %p139
    %p141 = scmp.ne.s32.totalorder %s132, %s133
    %p142 = scmp.eq.s32.totalorder %s17, 0
    %p143 = por %p141, %p142
    %p144 = scmp.ne.s32.totalorder %s132, %s133
    %p145 = scmp.eq.s32.totalorder %s18, 1
    %p146 = por %p144, %p145
    %p148 = scmp.ne.s32.totalorder %s133, %s147
    %p149 = scmp.eq.s32.totalorder %s18, 0
    %p150 = por %p148, %p149
    %s151 = ssub.s32 %s12, %s19
    %p152 = scmp.eq.s32.totalorder %s151, 0
    %s154 = sadd.s32 %s153, 1
    %s155 = scalar_select %p152, %s153, %s154
    %p158 = pneg %p152
    %p159 = scmp.eq.s32.totalorder %s12, 1
    %p160 = por %p158, %p159
    %p161 = scmp.ne.s32.totalorder %s153, %s156
    %p162 = scmp.eq.s32.totalorder %s12, 0
    %p163 = por %p161, %p162
    %p164 = scmp.ne.s32.totalorder %s153, %s156
    %p165 = scmp.eq.s32.totalorder %s17, 1
    %p166 = por %p164, %p165
    %p167 = scmp.ne.s32.totalorder %s156, %s157
    %p168 = scmp.eq.s32.totalorder %s17, 0
    %p169 = por %p167, %p168
    %p170 = scmp.ne.s32.totalorder %s156, %s157
    %p171 = scmp.eq.s32.totalorder %s18, 1
    %p172 = por %p170, %p171
    %p174 = scmp.ne.s32.totalorder %s157, %s173
    %p175 = scmp.eq.s32.totalorder %s18, 0
    %p176 = por %p174, %p175
    %p177 = scmp.le.s32.totalorder 1, %s12
    %p178 = scmp.lt.s32.totalorder %s12, 3
    %p179 = pnand %p177, %p178
    %p180 = pneg %p179
    // Predicated region
    $region9: #{tpu_custom_call.1} parent=5 // pred_check
      _
    $region10: #{tpu_custom_call.1} parent=5 // pred_check_branch
      %182 = sbr.rel (%p179) target = $region12
    $region11: #{tpu_custom_call.1} parent=5 // pred_region
      %s183 = ssub.s32 %s12, 1
      // Predicated region
      $region13: #{tpu_custom_call.1} parent=11 // pred_check
        %p184 = pneg %p59
      $region14: #{tpu_custom_call.1} parent=11 // pred_check_branch
        %186 = sbr.rel (%p184) target = $region16
      $region15: #{tpu_custom_call.1} parent=11 // pred_region
        _
      $region16: #{tpu_custom_call.1} parent=11 // pred_fallthru
        _
      // Predicated region
      $region17: #{tpu_custom_call.1} parent=11 // pred_check
        %p187 = pneg %p80
      $region18: #{tpu_custom_call.1} parent=11 // pred_check_branch
        %189 = sbr.rel (%p187) target = $region20
      $region19: #{tpu_custom_call.1} parent=11 // pred_region
        _
      $region20: #{tpu_custom_call.1} parent=11 // pred_fallthru
        _
      // Predicated region
      $region21: #{tpu_custom_call.1} parent=11 // pred_check
        %p190 = pneg %p101
      $region22: #{tpu_custom_call.1} parent=11 // pred_check_branch
        %192 = sbr.rel (%p190) target = $region24
      $region23: #{tpu_custom_call.1} parent=11 // pred_region
        _
      $region24: #{tpu_custom_call.1} parent=11 // pred_fallthru
        _
      // Predicated region
      $region25: #{tpu_custom_call.1} parent=11 // pred_check
        %p193 = pneg %p122
      $region26: #{tpu_custom_call.1} parent=11 // pred_check_branch
        %195 = sbr.rel (%p193) target = $region28
      $region27: #{tpu_custom_call.1} parent=11 // pred_region
        _
      $region28: #{tpu_custom_call.1} parent=11 // pred_fallthru
        _
      // Predicated region
      $region29: #{tpu_custom_call.1} parent=11 // pred_check
        %p196 = pneg %p143
      $region30: #{tpu_custom_call.1} parent=11 // pred_check_branch
        %198 = sbr.rel (%p196) target = $region32
      $region31: #{tpu_custom_call.1} parent=11 // pred_region
        _
      $region32: #{tpu_custom_call.1} parent=11 // pred_fallthru
        _
    $region12: #{tpu_custom_call.1} parent=5 // pred_fallthru
      _
    %p199 = scmp.lt.s32.totalorder %s12, 2
    // Predicated region
    $region33: #{tpu_custom_call.1} parent=5 // pred_check
      %p200 = pneg %p199
    $region34: #{tpu_custom_call.1} parent=5 // pred_check_branch
      %202 = sbr.rel (%p200) target = $region36
    $region35: #{tpu_custom_call.1} parent=5 // pred_region
      // Predicated region
      $region37: #{tpu_custom_call.1} parent=35 // pred_check
        %p203 = pneg %p32
      $region38: #{tpu_custom_call.1} parent=35 // pred_check_branch
        %205 = sbr.rel (%p203) target = $region40
      $region39: #{tpu_custom_call.1} parent=35 // pred_region
        %p206 = scmp.lt.s32.totalorder %s12, 1
        %s207 = scalar_select %p206, %s12, 1
        %s208 = smul.addr %s207, 2
        %s209 = smul.addr %s208, 4
        %s210 = scalar_lea.vmem %s0, %s209
      $region40: #{tpu_custom_call.1} parent=35 // pred_fallthru
        _
    $region36: #{tpu_custom_call.1} parent=5 // pred_fallthru
      _
    %p211 = scmp.le.s32.totalorder 1, %s12
    %p212 = scmp.lt.s32.totalorder %s12, 3
    %p213 = pnand %p211, %p212
    %p214 = pneg %p213
    // Predicated region
    $region41: #{tpu_custom_call.1} parent=5 // pred_check
      _
    $region42: #{tpu_custom_call.1} parent=5 // pred_check_branch
      %216 = sbr.rel (%p213) target = $region44
    $region43: #{tpu_custom_call.1} parent=5 // pred_region
      %s217 = ssub.s32 %s12, 1
      %p218 = scmp.lt.s32.totalorder %s17, 1
      %s219 = scalar_select %p218, %s17, 1
      %s220 = smul.addr %s219, 2
      %s221 = smul.addr %s220, 4
      %s222 = scalar_lea.vmem %s0, %s221
      %p223 = pneg %p38
      %p224 = pneg %p35
      %p225 = pneg %p59
      %p226 = pneg %p56
      %p227 = pneg %p80
      %p228 = pneg %p77
      %p229 = pneg %p101
      %p230 = pneg %p98
      %p231 = pneg %p122
      %p232 = pneg %p119
      %p233 = pneg %p143
      %p234 = pneg %p140
      %p235 = pneg %p169
      %p236 = pneg %p166
      %p237 = scmp.lt.s32.totalorder %s17, 1
      %s238 = scalar_select %p237, %s17, 1
      %s239 = smul.addr %s238, 4
      %s240 = smul.addr %s239, 8
      %s241 = scalar_lea.vmem %s6, %s240
      %p242 = scmp.lt.s32.totalorder %s17, 1
      %s243 = scalar_select %p242, %s17, 1
      %s244 = smul.addr %s243, 2
      %s245 = smul.addr %s244, 4
      %s246 = scalar_lea.vmem %s0, %s245
      %p247 = scmp.lt.s32.totalorder %s17, 1
      %s248 = scalar_select %p247, %s17, 1
      %s249 = smul.addr %s248, 4
      %s250 = smul.addr %s249, 8
      %s251 = scalar_lea.vmem %s6, %s250
      %v252 = vld [vmem:[%s246] sm:$0xff]
      %v253 = vld [vmem:[%s1] sm:$0xff]
      %v254 = vld [vmem:[%s1 + $0x8] sm:$0xff]
      %v255 = vld [vmem:[%s1 + $0x10] sm:$0xff]
      %v256 = vld [vmem:[%s1 + $0x18] sm:$0xff]
      %v257 = vld [vmem:[%s1 + $0x20] sm:$0xff]
      %v258 = vld [vmem:[%s1 + $0x28] sm:$0xff]
      %v259 = vld [vmem:[%s1 + $0x30] sm:$0xff]
      %v260 = vld [vmem:[%s1 + $0x38] sm:$0xff]
      %v261 = vld [vmem:[%s1 + $0x40] sm:$0xff]
      %v262 = vld [vmem:[%s1 + $0x48] sm:$0xff]
      %v263 = vld [vmem:[%s1 + $0x50] sm:$0xff]
      %v264 = vld [vmem:[%s1 + $0x58] sm:$0xff]
      %v265 = vld [vmem:[%s1 + $0x60] sm:$0xff]
      %v266 = vld [vmem:[%s1 + $0x68] sm:$0xff]
      %v267 = vld [vmem:[%s1 + $0x70] sm:$0xff]
      %v268 = vld [vmem:[%s1 + $0x78] sm:$0xff]
      %v269 = vld [vmem:[%s1 + $0x80] sm:$0xff]
      %v270 = vld [vmem:[%s1 + $0x88] sm:$0xff]
      %v271 = vld [vmem:[%s1 + $0x90] sm:$0xff]
      %v272 = vld [vmem:[%s1 + $0x98] sm:$0xff]
      %v273 = vld [vmem:[%s1 + $0xa0] sm:$0xff]
      %v274 = vld [vmem:[%s1 + $0xa8] sm:$0xff]
      %v275 = vld [vmem:[%s1 + $0xb0] sm:$0xff]
      %v276 = vld [vmem:[%s1 + $0xb8] sm:$0xff]
      %v277 = vld [vmem:[%s1 + $0xc0] sm:$0xff]
      %v278 = vld [vmem:[%s1 + $0xc8] sm:$0xff]
      %v279 = vld [vmem:[%s1 + $0xd0] sm:$0xff]
      %v280 = vld [vmem:[%s1 + $0xd8] sm:$0xff]
      %v281 = vld [vmem:[%s1 + $0xe0] sm:$0xff]
      %v282 = vld [vmem:[%s1 + $0xe8] sm:$0xff]
      %v283 = vld [vmem:[%s1 + $0xf0] sm:$0xff]
      %v284 = vld [vmem:[%s1 + $0xf8] sm:$0xff]
      %286 = vst [vmem:[#allocation1] ss:$2 sm:$0xff] %v252
      %v287 = vld.sshfl [vmem:[#allocation1] sm:$0xff pattern:$0x75316420]
      %v288 = vld.sshfl [vmem:[#allocation1 + $0x8] sm:$0xff pattern:$0x75316420]
      %291 = vmatpush.msra.mxu0 %v268
      %292 = vmatpush.msra.mxu0 %v267
      %293 = vmatpush.msra.mxu0 %v266
      %294 = vmatpush.msra.mxu0 %v265
      %295 = vmatpush.msra.mxu0 %v264
      %296 = vmatpush.msra.mxu0 %v263
      %297 = vmatpush.msra.mxu0 %v262
      %298 = vmatpush.msra.mxu0 %v261
      %299 = vmatpush.msra.mxu0 %v260
      %300 = vmatpush.msra.mxu0 %v259
      %301 = vmatpush.msra.mxu0 %v258
      %302 = vmatpush.msra.mxu0 %v257
      %303 = vmatpush.msra.mxu0 %v256
      %304 = vmatpush.msra.mxu0 %v255
      %305 = vmatpush.msra.mxu0 %v254
      %306 = vmatpush.msra.mxu0 %v253
      %307 = vmatmul.f32.gmra.mxu0 %v287
      %v308 = vpop.f32.mrf.mxu0
      %v309 = vadd.f32 0.0, %v308
      %310 = vdwg.mxu0
      %311 = vmatpush.msra.mxu0 %v284
      %312 = vmatpush.msra.mxu0 %v283
      %313 = vmatpush.msra.mxu0 %v282
      %314 = vmatpush.msra.mxu0 %v281
      %315 = vmatpush.msra.mxu0 %v280
      %316 = vmatpush.msra.mxu0 %v279
      %317 = vmatpush.msra.mxu0 %v278
      %318 = vmatpush.msra.mxu0 %v277
      %319 = vmatpush.msra.mxu0 %v276
      %320 = vmatpush.msra.mxu0 %v275
      %321 = vmatpush.msra.mxu0 %v274
      %322 = vmatpush.msra.mxu0 %v273
      %323 = vmatpush.msra.mxu0 %v272
      %324 = vmatpush.msra.mxu0 %v271
      %325 = vmatpush.msra.mxu0 %v270
      %326 = vmatpush.msra.mxu0 %v269
      %327 = vmatmul.f32.gmra.mxu0 %v288
      %v328 = vpop.f32.mrf.mxu0
      %v329 = vadd.f32 %v309, %v328
      %330 = vdwg.mxu0
      %v331 = vld [vmem:[%s2] sm:$0xf]
      %333 = vset.pattern.permute.xlu0 0
      %334 = vperm.xlu0 %333, %v329
      %v335 = vpop.permute.xlu0 %334
      %v337 = vmul.f32 %v331, %v335
      %s338 = scalar_lea.vmem %s2, 4
      %v339 = vld [vmem:[%s338] sm:$0xf]
      %340 = vset.pattern.permute.xlu0 1
      %341 = vperm.xlu0 %340, %v329
      %v342 = vpop.permute.xlu0 %341
      %v344 = vmul.f32 %v339, %v342
      %v345 = vadd.f32 %v337, %v344
      %s346 = scalar_lea.vmem %s2, 8
      %v347 = vld [vmem:[%s346] sm:$0xf]
      %348 = vset.pattern.permute.xlu0 2
      %349 = vperm.xlu0 %348, %v329
      %v350 = vpop.permute.xlu0 %349
      %v352 = vmul.f32 %v347, %v350
      %v353 = vadd.f32 %v345, %v352
      %s354 = scalar_lea.vmem %s2, 12
      %v355 = vld [vmem:[%s354] sm:$0xf]
      %356 = vset.pattern.permute.xlu0 3
      %357 = vperm.xlu0 %356, %v329
      %v358 = vpop.permute.xlu0 %357
      %v360 = vmul.f32 %v355, %v358
      %v361 = vadd.f32 %v353, %v360
      %s362 = scalar_lea.vmem %s2, 16
      %v363 = vld [vmem:[%s362] sm:$0xf]
      %364 = vset.pattern.permute.xlu0 4
      %365 = vperm.xlu0 %364, %v329
      %v366 = vpop.permute.xlu0 %365
      %v368 = vmul.f32 %v363, %v366
      %v369 = vadd.f32 %v361, %v368
      %s370 = scalar_lea.vmem %s2, 20
      %v371 = vld [vmem:[%s370] sm:$0xf]
      %372 = vset.pattern.permute.xlu0 5
      %373 = vperm.xlu0 %372, %v329
      %v374 = vpop.permute.xlu0 %373
      %v376 = vmul.f32 %v371, %v374
      %v377 = vadd.f32 %v369, %v376
      %s378 = scalar_lea.vmem %s2, 24
      %v379 = vld [vmem:[%s378] sm:$0xf]
      %380 = vset.pattern.permute.xlu0 6
      %381 = vperm.xlu0 %380, %v329
      %v382 = vpop.permute.xlu0 %381
      %v384 = vmul.f32 %v379, %v382
      %v385 = vadd.f32 %v377, %v384
      %s386 = scalar_lea.vmem %s2, 28
      %v387 = vld [vmem:[%s386] sm:$0xf]
      %388 = vset.pattern.permute.xlu0 7
      %389 = vperm.xlu0 %388, %v329
      %v390 = vpop.permute.xlu0 %389
      %v392 = vmul.f32 %v387, %v390
      %v393 = vadd.f32 %v385, %v392
      %s394 = scalar_lea.vmem %s2, 32
      %v395 = vld [vmem:[%s394] sm:$0xf]
      %396 = vset.pattern.permute.xlu0 8
      %397 = vperm.xlu0 %396, %v329
      %v398 = vpop.permute.xlu0 %397
      %v400 = vmul.f32 %v395, %v398
      %v401 = vadd.f32 %v393, %v400
      %vm402 = vcmask 11264
      %v403 = vsel %vm402, %v401, 0.0
      %v404 = vrot.slane %v403, 4
      %v405 = vadd.f32 %v403, %v404
      %v406 = vrot.slane %v405, 2
      %v407 = vadd.f32 %v405, %v406
      %v408 = vrot.slane %v407, 1
      %v409 = vadd.f32 %v407, %v408
      %s410 = scalar_lea.vmem %s2, 36
      %v411 = vld [vmem:[%s410] sm:$0xf]
      %412 = vset.pattern.permute.xlu0 9
      %413 = vperm.xlu0 %412, %v329
      %v414 = vpop.permute.xlu0 %413
      %v416 = vmul.f32 %v411, %v414
      %s417 = scalar_lea.vmem %s2, 40
      %v418 = vld [vmem:[%s417] sm:$0xf]
      %419 = vset.pattern.permute.xlu0 10
      %420 = vperm.xlu0 %419, %v329
      %v421 = vpop.permute.xlu0 %420
      %v423 = vmul.f32 %v418, %v421
      %v424 = vadd.f32 %v416, %v423
      %s425 = scalar_lea.vmem %s2, 44
      %v426 = vld [vmem:[%s425] sm:$0xf]
      %427 = vset.pattern.permute.xlu0 11
      %428 = vperm.xlu0 %427, %v329
      %v429 = vpop.permute.xlu0 %428
      %v431 = vmul.f32 %v426, %v429
      %v432 = vadd.f32 %v424, %v431
      %s433 = scalar_lea.vmem %s2, 48
      %v434 = vld [vmem:[%s433] sm:$0xf]
      %435 = vset.pattern.permute.xlu0 12
      %436 = vperm.xlu0 %435, %v329
      %v437 = vpop.permute.xlu0 %436
      %v439 = vmul.f32 %v434, %v437
      %v440 = vadd.f32 %v432, %v439
      %s441 = scalar_lea.vmem %s2, 52
      %v442 = vld [vmem:[%s441] sm:$0xf]
      %443 = vset.pattern.permute.xlu0 13
      %444 = vperm.xlu0 %443, %v329
      %v445 = vpop.permute.xlu0 %444
      %v447 = vmul.f32 %v442, %v445
      %v448 = vadd.f32 %v440, %v447
      %s449 = scalar_lea.vmem %s2, 56
      %v450 = vld [vmem:[%s449] sm:$0xf]
      %451 = vset.pattern.permute.xlu0 14
      %452 = vperm.xlu0 %451, %v329
      %v453 = vpop.permute.xlu0 %452
      %v455 = vmul.f32 %v450, %v453
      %v456 = vadd.f32 %v448, %v455
      %s457 = scalar_lea.vmem %s2, 60
      %v458 = vld [vmem:[%s457] sm:$0xf]
      %459 = vset.pattern.permute.xlu0 15
      %460 = vperm.xlu0 %459, %v329
      %v461 = vpop.permute.xlu0 %460
      %v463 = vmul.f32 %v458, %v461
      %v464 = vadd.f32 %v456, %v463
      %s465 = scalar_lea.vmem %s2, 64
      %v466 = vld [vmem:[%s465] sm:$0xf]
      %467 = vset.pattern.permute.xlu0 16
      %468 = vperm.xlu0 %467, %v329
      %v469 = vpop.permute.xlu0 %468
      %v471 = vmul.f32 %v466, %v469
      %v472 = vadd.f32 %v464, %v471
      %s473 = scalar_lea.vmem %s2, 68
      %v474 = vld [vmem:[%s473] sm:$0xf]
      %475 = vset.pattern.permute.xlu0 17
      %476 = vperm.xlu0 %475, %v329
      %v477 = vpop.permute.xlu0 %476
      %v479 = vmul.f32 %v474, %v477
      %v480 = vadd.f32 %v472, %v479
      %v481 = vsel %vm402, %v480, 0.0
      %v482 = vrot.slane %v481, 4
      %v483 = vadd.f32 %v481, %v482
      %v484 = vrot.slane %v483, 2
      %v485 = vadd.f32 %v483, %v484
      %v486 = vrot.slane %v485, 1
      %v487 = vadd.f32 %v485, %v486
      %s488 = scalar_lea.vmem %s2, 72
      %v489 = vld [vmem:[%s488] sm:$0xf]
      %490 = vset.pattern.permute.xlu0 18
      %491 = vperm.xlu0 %490, %v329
      %v492 = vpop.permute.xlu0 %491
      %v494 = vmul.f32 %v489, %v492
      %s495 = scalar_lea.vmem %s2, 76
      %v496 = vld [vmem:[%s495] sm:$0xf]
      %497 = vset.pattern.permute.xlu0 19
      %498 = vperm.xlu0 %497, %v329
      %v499 = vpop.permute.xlu0 %498
      %v501 = vmul.f32 %v496, %v499
      %v502 = vadd.f32 %v494, %v501
      %s503 = scalar_lea.vmem %s2, 80
      %v504 = vld [vmem:[%s503] sm:$0xf]
      %505 = vset.pattern.permute.xlu0 20
      %506 = vperm.xlu0 %505, %v329
      %v507 = vpop.permute.xlu0 %506
      %v509 = vmul.f32 %v504, %v507
      %v510 = vadd.f32 %v502, %v509
      %s511 = scalar_lea.vmem %s2, 84
      %v512 = vld [vmem:[%s511] sm:$0xf]
      %513 = vset.pattern.permute.xlu0 21
      %514 = vperm.xlu0 %513, %v329
      %v515 = vpop.permute.xlu0 %514
      %v517 = vmul.f32 %v512, %v515
      %v518 = vadd.f32 %v510, %v517
      %s519 = scalar_lea.vmem %s2, 88
      %v520 = vld [vmem:[%s519] sm:$0xf]
      %521 = vset.pattern.permute.xlu0 22
      %522 = vperm.xlu0 %521, %v329
      %v523 = vpop.permute.xlu0 %522
      %v525 = vmul.f32 %v520, %v523
      %v526 = vadd.f32 %v518, %v525
      %s527 = scalar_lea.vmem %s2, 92
      %v528 = vld [vmem:[%s527] sm:$0xf]
      %529 = vset.pattern.permute.xlu0 23
      %530 = vperm.xlu0 %529, %v329
      %v531 = vpop.permute.xlu0 %530
      %v533 = vmul.f32 %v528, %v531
      %v534 = vadd.f32 %v526, %v533
      %s535 = scalar_lea.vmem %s2, 96
      %v536 = vld [vmem:[%s535] sm:$0xf]
      %537 = vset.pattern.permute.xlu0 24
      %538 = vperm.xlu0 %537, %v329
      %v539 = vpop.permute.xlu0 %538
      %v541 = vmul.f32 %v536, %v539
      %v542 = vadd.f32 %v534, %v541
      %s543 = scalar_lea.vmem %s2, 100
      %v544 = vld [vmem:[%s543] sm:$0xf]
      %545 = vset.pattern.permute.xlu0 25
      %546 = vperm.xlu0 %545, %v329
      %v547 = vpop.permute.xlu0 %546
      %v549 = vmul.f32 %v544, %v547
      %v550 = vadd.f32 %v542, %v549
      %s551 = scalar_lea.vmem %s2, 104
      %v552 = vld [vmem:[%s551] sm:$0xf]
      %553 = vset.pattern.permute.xlu0 26
      %554 = vperm.xlu0 %553, %v329
      %v555 = vpop.permute.xlu0 %554
      %v557 = vmul.f32 %v552, %v555
      %v558 = vadd.f32 %v550, %v557
      %v559 = vsel %vm402, %v558, 0.0
      %v560 = vrot.slane %v559, 4
      %v561 = vadd.f32 %v559, %v560
      %v562 = vrot.slane %v561, 2
      %v563 = vadd.f32 %v561, %v562
      %v564 = vrot.slane %v563, 1
      %v565 = vadd.f32 %v563, %v564
      %vm566 = vcmask 1040384
      %v567 = vsel %vm566, %v409, %v487
      %vm568 = vcmask 1041408
      %v569 = vsel %vm568, %v567, %v565
      %570 = vxpose.xlu0.b32.start [1/16] %v569, 128
      %571 = vxpose.xlu0.b32.cont [2/16] 0.0, 128
      %572 = vxpose.xlu0.b32.cont [3/16] 0.0, 128
      %573 = vxpose.xlu0.b32.cont [4/16] 0.0, 128
      %574 = vxpose.xlu0.b32.cont [5/16] 0.0, 128
      %575 = vxpose.xlu0.b32.cont [6/16] 0.0, 128
      %576 = vxpose.xlu0.b32.cont [7/16] 0.0, 128
      %577 = vxpose.xlu0.b32.cont [8/16] 0.0, 128
      %578 = vxpose.xlu0.b32.cont [9/16] 0.0, 128
      %579 = vxpose.xlu0.b32.cont [10/16] 0.0, 128
      %580 = vxpose.xlu0.b32.cont [11/16] 0.0, 128
      %581 = vxpose.xlu0.b32.cont [12/16] 0.0, 128
      %582 = vxpose.xlu0.b32.cont [13/16] 0.0, 128
      %583 = vxpose.xlu0.b32.cont [14/16] 0.0, 128
      %584 = vxpose.xlu0.b32.cont [15/16] 0.0, 128
      %585 = vxpose.xlu0.b32.end [16/16] 0.0, 128
      %v586 = vpop.trf.xlu0
      %v587 = vpop.trf.xlu0
      %v588 = vpop.trf.xlu0
      %v589 = vpop.trf.xlu0
      %v590 = vpop.trf.xlu0
      %v591 = vpop.trf.xlu0
      %v592 = vpop.trf.xlu0
      %v593 = vpop.trf.xlu0
      %v594 = vpop.trf.xlu0
      %v595 = vpop.trf.xlu0
      %v596 = vpop.trf.xlu0
      %v597 = vpop.trf.xlu0
      %v598 = vpop.trf.xlu0
      %v599 = vpop.trf.xlu0
      %v600 = vpop.trf.xlu0
      %v601 = vpop.trf.xlu0
      %v602 = vld [vmem:[%s3] sm:$0x3]
      %v603 = vadd.f32 %v586, %v602
      %v604 = vld [vmem:[%s4] sm:$0xf]
      %v605 = vld [vmem:[%s5] sm:$0xf]
      %607 = vset.pattern.permute.xlu0 0
      %608 = vperm.xlu0 %607, %v605
      %v609 = vpop.permute.xlu0 %608
      %vm611 = vcmask 15360
      %v613 = vsel %vm611, %v604, 0
      %v616 = vsel %vm568, %v603, 0
      %618 = vmatpush.msra.mxu0 0.0
      %619 = vmatpush.msra.mxu0 0.0
      %620 = vmatpush.msra.mxu0 0.0
      %621 = vmatpush.msra.mxu0 0.0
      %622 = vmatpush.msra.mxu0 0.0
      %623 = vmatpush.msra.mxu0 0.0
      %624 = vmatpush.msra.mxu0 0.0
      %625 = vmatpush.msra.mxu0 0.0
      %626 = vmatpush.msra.mxu0 0.0
      %627 = vmatpush.msra.mxu0 0.0
      %628 = vmatpush.msra.mxu0 0.0
      %629 = vmatpush.msra.mxu0 0.0
      %630 = vmatpush.msra.mxu0 0.0
      %631 = vmatpush.msra.mxu0 0.0
      %632 = vmatpush.msra.mxu0 0.0
      %633 = vmatpush.msra.mxu0 %v616
      %634 = vmatmul.f32.gmra.mxu0 %v613
      %v635 = vpop.f32.mrf.mxu0
      %v636 = vadd.f32 %v609, %v635
      %637 = vdwg.mxu0
      %v638 = vmax.f32 %v636, 0.0
      %640 = vset.pattern.permute.xlu0 0
      %641 = vperm.xlu0 %640, %v638
      %v642 = vpop.permute.xlu0 %641
      %644 = vset.pattern.permute.xlu0 1
      %645 = vperm.xlu0 %644, %v638
      %v646 = vpop.permute.xlu0 %645
      %647 = vset.pattern.permute.xlu0 2
      %648 = vperm.xlu0 %647, %v638
      %v649 = vpop.permute.xlu0 %648
      %v651 = vrot.slane %v646, 4
      %vm653 = vcmask 1043456
      %v654 = vsel %vm653, %v642, %v651
      %655 = vst [vmem:[%s251] sm:$0xff] %v654
      %656 = vst [vmem:[%s251 + $0x8] sm:$0xff] %v654
      %657 = vst [vmem:[%s251 + $0x10] sm:$0xf] %v649
      %658 = vst [vmem:[%s251 + $0x18] sm:$0xf] %v649
      %p659 = scmp.lt.s32.totalorder %s17, 1
      %s660 = scalar_select %p659, %s17, 1
      %s661 = smul.addr %s660, 4
      %s662 = smul.addr %s661, 8
      %s663 = scalar_lea.vmem %s6, %s662
      // Predicated region
      $region45: #{tpu_custom_call.1} parent=43 // pred_check
        %p664 = pneg %p166
      $region46: #{tpu_custom_call.1} parent=43 // pred_check_branch
        %666 = sbr.rel (%p664) target = $region48
      $region47: #{tpu_custom_call.1} parent=43 // pred_region
        _
      $region48: #{tpu_custom_call.1} parent=43 // pred_fallthru
        _
    $region44: #{tpu_custom_call.1} parent=5 // pred_fallthru
      _
    %p667 = scmp.le.s32.totalorder 2, %s12
    // Predicated region
    $region49: #{tpu_custom_call.1} parent=5 // pred_check
      %p668 = pneg %p667
    $region50: #{tpu_custom_call.1} parent=5 // pred_check_branch
      %670 = sbr.rel (%p668) target = $region52
    $region51: #{tpu_custom_call.1} parent=5 // pred_region
      %s671 = ssub.s32 %s12, 2
      // Predicated region
      $region53: #{tpu_custom_call.1} parent=51 // pred_check
        %p672 = pneg %p172
      $region54: #{tpu_custom_call.1} parent=51 // pred_check_branch
        %674 = sbr.rel (%p672) target = $region56
      $region55: #{tpu_custom_call.1} parent=51 // pred_region
        %p675 = scmp.lt.s32.totalorder %s18, 1
        %s676 = scalar_select %p675, %s18, 1
        %s677 = smul.addr %s676, 4
        %s678 = smul.addr %s677, 8
        %s679 = scalar_lea.vmem %s6, %s678
      $region56: #{tpu_custom_call.1} parent=51 // pred_fallthru
        _
    $region52: #{tpu_custom_call.1} parent=5 // pred_fallthru
      _
  $region6: #{tpu_custom_call.1} parent=0 // loop_footer
    %s16 = sadd.s32 1, %s12
  $region7: #{tpu_custom_call.1} parent=0 // loop_footer_branch
    %11 = sbr.rel target = $region3
  $region8: #{tpu_custom_call.1} parent=0 // loop_exit
    _

</llo_original>
